<compile_context>
chip_gen: v6e
topology: v6e:2x2x1
jax: 0.10.0
libtpu: 0.0.40
codegen_flags: <defaults>
</compile_context>

<pallas_src>
import functools
import math

import jax
import jax.numpy as jnp
from jax.experimental import pallas as pl
from jax.experimental.pallas import tpu as pltpu


def _round_up(x, m):
    return (x + m - 1) // m * m


@functools.lru_cache(maxsize=1)
def _vmem_capacity():
    try:
        return int(pltpu.get_tpu_info().vmem_capacity_bytes)
    except Exception:  # noqa: BLE001 - conservative fallback valid on v5e/v6e/v7x
        return 64 << 20


def _vmem_limit(block_bytes):
    cap = _vmem_capacity() - (4 << 20)       # headroom for Mosaic scratch
    want = 2 * block_bytes + (8 << 20)       # double-buffered blocks + temps
    return int(max(min(want, cap), 16 << 20))


# ---------------------------------------------------------------------------
# Exact-GELU probe: use erf-GELU (PyTorch activation='gelu') when lax.erf
# lowers on this Mosaic version, otherwise fall back to the tanh approximation.
# ---------------------------------------------------------------------------
@functools.lru_cache(maxsize=1)
def _erf_lowers() -> bool:
    def _k(x_ref, o_ref):
        o_ref[...] = jax.lax.erf(x_ref[...])

    try:
        out = pl.pallas_call(
            _k, out_shape=jax.ShapeDtypeStruct((8, 128), jnp.float32)
        )(jnp.zeros((8, 128), jnp.float32))
        jax.block_until_ready(out)
        return True
    except Exception:  # noqa: BLE001 - any lowering/compile failure => fallback
        return False


def _gelu(x, exact):
    if exact:
        return 0.5 * x * (1.0 + jax.lax.erf(x * (1.0 / math.sqrt(2.0))))
    # TODO(synk): tanh approximation only used if lax.erf fails to lower.
    c = math.sqrt(2.0 / math.pi)
    return 0.5 * x * (1.0 + jnp.tanh(c * (x + 0.044715 * x * x * x)))


def _layernorm(x, g, b, eps=1e-5):
    mean = jnp.mean(x, axis=-1, keepdims=True)
    var = jnp.mean((x - mean) ** 2, axis=-1, keepdims=True)
    return (x - mean) * jax.lax.rsqrt(var + eps) * g + b


# ---------------------------------------------------------------------------
# Pallas kernels
# ---------------------------------------------------------------------------
def _patch_embed_kernel(p_ref, w_ref, b_ref, cls_ref, pos_ref, o_ref, *, seq_valid):
    """Fused: patches @ W + b, CLS prepend (row 0), + positional embedding."""
    s_pad = o_ref.shape[1]
    emb = jnp.dot(p_ref[0], w_ref[...], preferred_element_type=jnp.float32)
    emb = emb + b_ref[...]
    row = jax.lax.broadcasted_iota(jnp.int32, (s_pad, 1), 0)
    tok = jnp.where(row == 0, cls_ref[...], emb)                 # row 0 = CLS
    tok = jnp.where(row < seq_valid, tok + pos_ref[...], 0.0)    # +pos, zero pads
    o_ref[0] = tok


def _encoder_stack_kernel(
    x_ref, mask_ref,
    wqkv_ref, bqkv_ref, wo_ref, bo_ref,
    ln1g_ref, ln1b_ref,
    w1_ref, b1_ref, w2_ref, b2_ref,
    ln2g_ref, ln2b_ref,
    o_ref,
    *, n_head, head_dim, seq_valid, exact_gelu, has_pad,
):
    """All L TransformerEncoderLayers (post-norm, batch_first, eval mode).

    Grid = (batch, layer); the activation lives in o_ref across the layer axis.
    """
    @pl.when(pl.program_id(1) == 0)
    def _():
        o_ref[...] = x_ref[...]

    s_pad = o_ref.shape[1]
    d = n_head * head_dim

    x = o_ref[0]                                  # (S, D) f32 residual path
    xb = x.astype(jnp.bfloat16)

    # ---- fused Q/K/V projection: one full-lane-width MXU matmul ------------
    qkv = jnp.dot(xb, wqkv_ref[0], preferred_element_type=jnp.float32)
    qkv = qkv + bqkv_ref[0]          # 1/sqrt(head_dim) folded into Q cols/bias
    q = qkv[:, :d]
    k = qkv[:, d:2 * d]
    v = qkv[:, 2 * d:]

    # ---- attention (softmax stats in f32; dropout identity in eval) --------
    mask = mask_ref[...] if has_pad else None     # (1, S_pad) additive key bias
    ctx_parts = []
    for h in range(n_head):
        sl = slice(h * head_dim, (h + 1) * head_dim)
        qh = q[:, sl].astype(jnp.bfloat16)
        kh = k[:, sl].astype(jnp.bfloat16)
        vh = v[:, sl].astype(jnp.bfloat16)
        s = jnp.einsum("qd,kd->qk", qh, kh,
                       preferred_element_type=jnp.float32)       # (S, S)
        if has_pad:
            s = s + mask                                          # mask pad keys
        m = jnp.max(s, axis=-1, keepdims=True)
        p = jnp.exp(s - m)
        p = p * pl.reciprocal(jnp.sum(p, axis=-1, keepdims=True), approx=True)
        ctx_parts.append(jnp.dot(p.astype(jnp.bfloat16), vh,
                                 preferred_element_type=jnp.float32))

    # Output projection: one (S, D) @ (D, D) matmul on concatenated heads.
    ctx = jnp.concatenate(ctx_parts, axis=-1).astype(jnp.bfloat16)   # (S, D)
    attn = jnp.dot(ctx, wo_ref[0], preferred_element_type=jnp.float32)
    attn = attn + bo_ref[0]

    # residual + LayerNorm1 (PyTorch norm_first=False)
    x = _layernorm(x + attn, ln1g_ref[0], ln1b_ref[0])

    # ---- FFN: D -> 4D -> GELU -> D (bf16 matmuls, f32 accumulation) --------
    h1 = jnp.dot(x.astype(jnp.bfloat16), w1_ref[0],
                 preferred_element_type=jnp.float32) + b1_ref[0]
    h1 = _gelu(h1, exact_gelu)
    h2 = jnp.dot(h1.astype(jnp.bfloat16), w2_ref[0],
                 preferred_element_type=jnp.float32) + b2_ref[0]

    # residual + LayerNorm2
    x = _layernorm(x + h2, ln2g_ref[0], ln2b_ref[0])

    if has_pad:
        # Keep pad rows exactly zero so they cannot drift across layers.
        row = jax.lax.broadcasted_iota(jnp.int32, (s_pad, 1), 0)
        x = jnp.where(row < seq_valid, x, 0.0)

    o_ref[0] = x


def _final_ln_kernel(x_ref, g_ref, b_ref, o_ref):
    o_ref[...] = _layernorm(x_ref[...], g_ref[...], b_ref[...])


# ---------------------------------------------------------------------------
# pallas_call wrappers
# ---------------------------------------------------------------------------
def patch_embed(patches, w, b, cls, pos, *, seq_valid):
    n, s_pad, k_pad = patches.shape
    d = w.shape[1]

    blk = (s_pad * k_pad * 2        # patches block (bf16)
           + k_pad * d * 2          # weight (bf16)
           + 3 * s_pad * d * 4      # pos + out block + emb temporary (f32)
           + 4 * d * 4)             # bias / cls / misc
    return pl.pallas_call(
        functools.partial(_patch_embed_kernel, seq_valid=seq_valid),
        grid=(n,),
        in_specs=[
            pl.BlockSpec((1, s_pad, k_pad), lambda i: (i, 0, 0)),
            pl.BlockSpec((k_pad, d), lambda i: (0, 0)),
            pl.BlockSpec((1, d), lambda i: (0, 0)),
            pl.BlockSpec((1, d), lambda i: (0, 0)),
            pl.BlockSpec((s_pad, d), lambda i: (0, 0)),
        ],
        out_specs=pl.BlockSpec((1, s_pad, d), lambda i: (i, 0, 0)),
        out_shape=jax.ShapeDtypeStruct((n, s_pad, d), jnp.float32),
        compiler_params=pltpu.CompilerParams(
            dimension_semantics=("parallel",),
            vmem_limit_bytes=_vmem_limit(blk)),
    )(patches, w, b, cls, pos)


def encoder_stack(x, stacked, *, n_head, seq_valid):
    """Run all transformer layers in a single fused pallas_call."""
    n, s_pad, d = x.shape
    n_layer = stacked["wqkv"].shape[0]
    head_dim = d // n_head
    d4 = 4 * d
    has_pad = seq_valid < s_pad

    if has_pad:
        mask = jnp.where(jnp.arange(s_pad) < seq_valid, 0.0, -1e30)
    else:
        mask = jnp.zeros((s_pad,))
    mask = mask.astype(jnp.float32).reshape(1, s_pad)

    kernel = functools.partial(
        _encoder_stack_kernel,
        n_head=n_head, head_dim=head_dim, seq_valid=seq_valid,
        exact_gelu=_erf_lowers(), has_pad=has_pad,
    )

    in_specs = [
        pl.BlockSpec((1, s_pad, d), lambda nn, ll: (nn, 0, 0)),      # x (read @ l==0)
        pl.BlockSpec((1, s_pad), lambda nn, ll: (0, 0)),             # key-mask bias
        pl.BlockSpec((1, d, 3 * d), lambda nn, ll: (ll, 0, 0)),      # wqkv
        pl.BlockSpec((1, 1, 3 * d), lambda nn, ll: (ll, 0, 0)),      # bqkv
        pl.BlockSpec((1, d, d), lambda nn, ll: (ll, 0, 0)),          # wo
        pl.BlockSpec((1, 1, d), lambda nn, ll: (ll, 0, 0)),          # bo
        pl.BlockSpec((1, 1, d), lambda nn, ll: (ll, 0, 0)),          # ln1 gamma
        pl.BlockSpec((1, 1, d), lambda nn, ll: (ll, 0, 0)),          # ln1 beta
        pl.BlockSpec((1, d, d4), lambda nn, ll: (ll, 0, 0)),         # w1
        pl.BlockSpec((1, 1, d4), lambda nn, ll: (ll, 0, 0)),         # b1
        pl.BlockSpec((1, d4, d), lambda nn, ll: (ll, 0, 0)),         # w2
        pl.BlockSpec((1, 1, d), lambda nn, ll: (ll, 0, 0)),          # b2
        pl.BlockSpec((1, 1, d), lambda nn, ll: (ll, 0, 0)),          # ln2 gamma
        pl.BlockSpec((1, 1, d), lambda nn, ll: (ll, 0, 0)),          # ln2 beta
    ]
    args = (
        x, mask,
        stacked["wqkv"], stacked["bqkv"], stacked["wo"], stacked["bo"],
        stacked["ln1g"], stacked["ln1b"],
        stacked["w1"], stacked["b1"], stacked["w2"], stacked["b2"],
        stacked["ln2g"], stacked["ln2b"],
    )

    # VMEM budget from tile sizes (resident activation + bf16 weights + temps).
    act = 2 * s_pad * d * 4                              # x in + resident out
    wts = (3 * d * d + d * d + 8 * d * d) * 2            # qkv + wo + ffn (bf16)
    tmp = (s_pad * 3 * d * 4                             # qkv f32
           + 4 * s_pad * s_pad * 4                       # scores / probs slack
           + 4 * s_pad * d * 4                           # ctx / attn / LN temps
           + s_pad * d4 * (4 + 2))                       # FFN hidden f32 + bf16
    vmem = _vmem_limit(act + wts + tmp)

    return pl.pallas_call(
        kernel,
        grid=(n, n_layer),
        in_specs=in_specs,
        out_specs=pl.BlockSpec((1, s_pad, d), lambda nn, ll: (nn, 0, 0)),
        out_shape=jax.ShapeDtypeStruct((n, s_pad, d), jnp.float32),
        compiler_params=pltpu.CompilerParams(
            dimension_semantics=("parallel", "arbitrary"),
            vmem_limit_bytes=vmem),
    )(*args)


def final_layernorm(cls_tokens, g, b):
    n, d = cls_tokens.shape
    return pl.pallas_call(
        _final_ln_kernel,
        out_shape=jax.ShapeDtypeStruct((n, d), jnp.float32),
    )(cls_tokens, g, b)


# ---------------------------------------------------------------------------
# Parameter init (deterministic, synthetic, kernel-friendly layout)
# ---------------------------------------------------------------------------
def init_params(key, image_size, patch_size, embed_dim, n_head, n_layer):
    D = embed_dim
    P = patch_size
    Hd = D // n_head
    K = 3 * P * P
    K_pad = _round_up(K, 128)
    S_valid = (image_size // patch_size) ** 2 + 1       # patches + CLS
    S_pad = _round_up(S_valid, 8)
    std = 0.02
    keys = jax.random.split(key, 4 + n_layer)

    # Conv2d(3, D, P, stride=P) == matmul against conv.weight.reshape(D, K).T.
    conv_w = jax.random.normal(keys[0], (D, 3, P, P), jnp.float32) * std
    conv_b = jax.random.normal(keys[1], (D,), jnp.float32) * std
    w_patch = jnp.zeros((K_pad, D), jnp.float32).at[:K].set(conv_w.reshape(D, K).T)

    cls = jax.random.normal(keys[2], (1, 1, D), jnp.float32) * 0.01
    pos = jax.random.normal(keys[3], (1, S_valid, D), jnp.float32) * 0.01

    params = {
        "w_patch": w_patch.astype(jnp.bfloat16),                 # (K_pad, D) bf16
        "b_patch": conv_b.reshape(1, D),                         # (1, D) f32
        "cls": cls.reshape(1, D),                                # (1, D) f32
        "pos": jnp.zeros((S_pad, D), jnp.float32).at[:S_valid].set(pos[0]),
        "lnf_g": jnp.ones((1, D), jnp.float32),
        "lnf_b": jnp.zeros((1, D), jnp.float32),
        "seq_valid": S_valid,
    }

    # NOTE: real PyTorch checkpoints: wq = in_proj_weight[:D].T, wk = [D:2D].T,
    # wv = [2D:].T, wo = out_proj.weight.T, and the Q bias must also be scaled
    # by 1/sqrt(head_dim) before packing (the scale is folded into Q here).
    scale = 1.0 / math.sqrt(Hd)
    acc = {k: [] for k in ("wqkv", "bqkv", "wo", "bo", "ln1g", "ln1b",
                           "w1", "b1", "w2", "b2", "ln2g", "ln2b")}
    for l in range(n_layer):
        lk = jax.random.split(keys[4 + l], 6)
        wq = jax.random.normal(lk[0], (D, D), jnp.float32) * std
        wk = jax.random.normal(lk[1], (D, D), jnp.float32) * std
        wv = jax.random.normal(lk[2], (D, D), jnp.float32) * std
        acc["wqkv"].append(jnp.concatenate([wq * scale, wk, wv], axis=1))  # (D,3D)
        acc["bqkv"].append(jnp.zeros((1, 3 * D), jnp.float32))
        acc["wo"].append(jax.random.normal(lk[3], (D, D), jnp.float32) * std)
        acc["bo"].append(jnp.zeros((1, D), jnp.float32))
        acc["ln1g"].append(jnp.ones((1, D), jnp.float32))
        acc["ln1b"].append(jnp.zeros((1, D), jnp.float32))
        acc["w1"].append(jax.random.normal(lk[4], (D, 4 * D), jnp.float32) * std)
        acc["b1"].append(jnp.zeros((1, 4 * D), jnp.float32))
        acc["w2"].append(jax.random.normal(lk[5], (4 * D, D), jnp.float32) * std)
        acc["b2"].append(jnp.zeros((1, D), jnp.float32))
        acc["ln2g"].append(jnp.ones((1, D), jnp.float32))
        acc["ln2b"].append(jnp.zeros((1, D), jnp.float32))

    bf16_keys = ("wqkv", "wo", "w1", "w2")
    params["layers"] = {
        k: jnp.stack(v).astype(jnp.bfloat16) if k in bf16_keys else jnp.stack(v)
        for k, v in acc.items()
    }
    return params


# ---------------------------------------------------------------------------
# Forward pass (layout glue in plain JAX, compute in Pallas)
# ---------------------------------------------------------------------------
def vision_encoder_forward(image, params, *, patch_size, n_head):
    N, C, H, W = image.shape
    P = patch_size
    Hp, Wp = H // P, W // P
    K = C * P * P
    K_pad = params["w_patch"].shape[0]
    S_pad = params["pos"].shape[0]
    S_valid = params["seq_valid"]

    # Patchify (pure layout glue == Conv2d(stride=P).flatten(2).transpose(1,2)):
    # (N,C,H,W) -> (N, Hp*Wp, C*P*P); row 0 left free for the CLS token,
    # K zero-padded to a lane multiple, cast to bf16 for the MXU.
    x = image.reshape(N, C, Hp, P, Wp, P)
    x = x.transpose(0, 2, 4, 1, 3, 5).reshape(N, Hp * Wp, K)
    x = jnp.pad(x, ((0, 0), (1, S_pad - S_valid), (0, K_pad - K)))
    x = x.astype(jnp.bfloat16)

    # Fused patch-embed + bias + CLS prepend + positional embedding.
    x = patch_embed(x, params["w_patch"], params["b_patch"],
                    params["cls"], params["pos"], seq_valid=S_valid)

    # All transformer layers in one fused Pallas kernel (batch x layer grid).
    x = encoder_stack(x, params["layers"], n_head=n_head, seq_valid=S_valid)

    # CLS pooling + final LayerNorm.
    cls_out = x[:, 0, :]
    return final_layernorm(cls_out, params["lnf_g"], params["lnf_b"])


if __name__ == "__main__":
    image_size, patch_size, embed_dim, n_head, n_layer = 16, 4, 32, 4, 2
    batch = 2

    key = jax.random.PRNGKey(0)
    pkey, xkey = jax.random.split(key)
    params = init_params(pkey, image_size, patch_size, embed_dim, n_head, n_layer)
    image = jax.random.normal(xkey, (batch, 3, image_size, image_size), jnp.float32)

    out = vision_encoder_forward(image, params, patch_size=patch_size, n_head=n_head)
    out = jax.block_until_ready(out)
    assert out.shape == (batch, embed_dim), out.shape
    assert bool(jnp.all(jnp.isfinite(out))), "non-finite output"
    print("KERNEL_OK")
</pallas_src>

<mosaic_0001>
module attributes {stable_mosaic.version = 11 : i64} {
  func.func @_patch_embed_kernel(%arg0: i32, %arg1: memref<1x24x128xbf16, #tpu.memory_space<vmem>>, %arg2: memref<128x32xbf16, #tpu.memory_space<vmem>>, %arg3: memref<1x32xf32, #tpu.memory_space<vmem>>, %arg4: memref<1x32xf32, #tpu.memory_space<vmem>>, %arg5: memref<24x32xf32, #tpu.memory_space<vmem>>, %arg6: memref<1x24x32xf32, #tpu.memory_space<vmem>>) attributes {dimension_semantics = [#tpu.dimension_semantics<parallel>], iteration_bounds = array<i64: 2>, scalar_prefetch = 0 : i64, scratch_operands = 0 : i64, tpu.core_type = #tpu.core_type<tc>, window_params = [{transform_indices = @transform_0, window_bounds = array<i64: 1, 24, 128>}, {pipeline_mode = #tpu.pipeline_mode<synchronous>, transform_indices = @transform_1, window_bounds = array<i64: 128, 32>}, {pipeline_mode = #tpu.pipeline_mode<synchronous>, transform_indices = @transform_2, window_bounds = array<i64: 1, 32>}, {pipeline_mode = #tpu.pipeline_mode<synchronous>, transform_indices = @transform_3, window_bounds = array<i64: 1, 32>}, {pipeline_mode = #tpu.pipeline_mode<synchronous>, transform_indices = @transform_4, window_bounds = array<i64: 24, 32>}, {transform_indices = @transform_5, window_bounds = array<i64: 1, 24, 32>}]} {
    %c0 = arith.constant 0 : index
    %c0_0 = arith.constant 0 : index
    %c0_1 = arith.constant 0 : index
    %0 = vector.load %arg1[%c0, %c0_0, %c0_1] : memref<1x24x128xbf16, #tpu.memory_space<vmem>>, vector<1x24x128xbf16>
    %1 = vector.shape_cast %0 : vector<1x24x128xbf16> to vector<24x128xbf16>
    %c0_2 = arith.constant 0 : index
    %c0_3 = arith.constant 0 : index
    %2 = vector.load %arg2[%c0_2, %c0_3] : memref<128x32xbf16, #tpu.memory_space<vmem>>, vector<128x32xbf16>
    %cst = arith.constant dense<0.000000e+00> : vector<24x32xf32>
    %3 = tpu.matmul %1, %2, %cst {dimension_numbers = #tpu.dot_dimension_numbers<[1], [0], [0], [1], [0, 0, 1, 1], [], []>} : vector<24x128xbf16>, vector<128x32xbf16>, vector<24x32xf32> -> vector<24x32xf32>
    %c0_4 = arith.constant 0 : index
    %c0_5 = arith.constant 0 : index
    %4 = vector.load %arg3[%c0_4, %c0_5] : memref<1x32xf32, #tpu.memory_space<vmem>>, vector<1x32xf32>
    %5 = vector.broadcast %4 : vector<1x32xf32> to vector<24x32xf32>
    %6 = arith.addf %3, %5 : vector<24x32xf32>
    %7 = tpu.iota {dimensions = array<i32: 0>} : vector<24x1xi32>
    %c0_i32 = arith.constant 0 : i32
    %8 = vector.broadcast %c0_i32 : i32 to vector<24x1xi32>
    %9 = arith.cmpi eq, %7, %8 : vector<24x1xi32>
    %c0_6 = arith.constant 0 : index
    %c0_7 = arith.constant 0 : index
    %10 = vector.load %arg4[%c0_6, %c0_7] : memref<1x32xf32, #tpu.memory_space<vmem>>, vector<1x32xf32>
    %11 = vector.shape_cast %9 : vector<24x1xi1> to vector<24x1xi1>
    %12 = vector.broadcast %11 : vector<24x1xi1> to vector<24x32xi1>
    %13 = vector.shape_cast %10 : vector<1x32xf32> to vector<1x32xf32>
    %14 = vector.broadcast %13 : vector<1x32xf32> to vector<24x32xf32>
    %15 = arith.select %12, %14, %6 : vector<24x32xi1>, vector<24x32xf32>
    %c17_i32 = arith.constant 17 : i32
    %16 = vector.broadcast %c17_i32 : i32 to vector<24x1xi32>
    %17 = arith.cmpi slt, %7, %16 : vector<24x1xi32>
    %c0_8 = arith.constant 0 : index
    %c0_9 = arith.constant 0 : index
    %18 = vector.load %arg5[%c0_8, %c0_9] : memref<24x32xf32, #tpu.memory_space<vmem>>, vector<24x32xf32>
    %19 = arith.addf %15, %18 : vector<24x32xf32>
    %cst_10 = arith.constant 0.000000e+00 : f32
    %20 = vector.shape_cast %17 : vector<24x1xi1> to vector<24x1xi1>
    %21 = vector.broadcast %20 : vector<24x1xi1> to vector<24x32xi1>
    %22 = vector.broadcast %cst_10 : f32 to vector<24x32xf32>
    %23 = arith.select %21, %19, %22 : vector<24x32xi1>, vector<24x32xf32>
    %c0_11 = arith.constant 0 : index
    %c0_12 = arith.constant 0 : index
    %c0_13 = arith.constant 0 : index
    %24 = vector.load %arg6[%c0_11, %c0_12, %c0_13] : memref<1x24x32xf32, #tpu.memory_space<vmem>>, vector<1x24x32xf32>
    %25 = vector.shape_cast %24 : vector<1x24x32xf32> to vector<24x32xf32>
    %26 = vector.shape_cast %23 : vector<24x32xf32> to vector<1x24x32xf32>
    tpu.vector_store %arg6[%c0_11, %c0_12, %c0_13], %26 {strides = array<i32>} : memref<1x24x32xf32, #tpu.memory_space<vmem>>, vector<1x24x32xf32>,
    return
  }
  func.func @transform_0(%arg0: i32) -> (i32, i32, i32) {
    %c0_i32 = arith.constant 0 : i32
    %c0_i32_0 = arith.constant 0 : i32
    %c0_i32_1 = arith.constant 0 : i32
    return %arg0, %c0_i32, %c0_i32_0 : i32, i32, i32
  }
  func.func @transform_1(%arg0: i32) -> (i32, i32) {
    %c0_i32 = arith.constant 0 : i32
    %c0_i32_0 = arith.constant 0 : i32
    %c0_i32_1 = arith.constant 0 : i32
    return %c0_i32, %c0_i32_0 : i32, i32
  }
  func.func @transform_2(%arg0: i32) -> (i32, i32) {
    %c0_i32 = arith.constant 0 : i32
    %c0_i32_0 = arith.constant 0 : i32
    %c0_i32_1 = arith.constant 0 : i32
    return %c0_i32, %c0_i32_0 : i32, i32
  }
  func.func @transform_3(%arg0: i32) -> (i32, i32) {
    %c0_i32 = arith.constant 0 : i32
    %c0_i32_0 = arith.constant 0 : i32
    %c0_i32_1 = arith.constant 0 : i32
    return %c0_i32, %c0_i32_0 : i32, i32
  }
  func.func @transform_4(%arg0: i32) -> (i32, i32) {
    %c0_i32 = arith.constant 0 : i32
    %c0_i32_0 = arith.constant 0 : i32
    %c0_i32_1 = arith.constant 0 : i32
    return %c0_i32, %c0_i32_0 : i32, i32
  }
  func.func @transform_5(%arg0: i32) -> (i32, i32, i32) {
    %c0_i32 = arith.constant 0 : i32
    %c0_i32_0 = arith.constant 0 : i32
    %c0_i32_1 = arith.constant 0 : i32
    return %arg0, %c0_i32, %c0_i32_0 : i32, i32, i32
  }
}

</mosaic_0001>

<llo_original>
// kernel: tpu_custom_call.1
$region0: #{tpu_custom_call.1}
  #allocation0 [shape = 'u32[]', space=smem, size = 0x4, offset = 0x4, fixed_abs, tag = 'smem constant byte address 0x4 - core index']
  #allocation1 [shape = 'u32[144,128]{1,0:T(1,128)}', space=vmem, size = 0x12000, scoped, tag = 'internal scratch']
  %s0 = inlined_call_operand.vmem [shape: bf16[2,24,128], index: 0, kind: input, shape index: {}]
  %s1 = inlined_call_operand.vmem [shape: bf16[128,32], index: 1, kind: input, shape index: {}]
  %s2 = inlined_call_operand.vmem [shape: f32[1,32], index: 2, kind: input, shape index: {}]
  %s3 = inlined_call_operand.vmem [shape: f32[1,32], index: 3, kind: input, shape index: {}]
  %s4 = inlined_call_operand.vmem [shape: f32[24,32], index: 4, kind: input, shape index: {}]
  %s5 = inlined_call_operand.hbm [shape: f32[2,24,32], index: 5, kind: output, shape index: {}]
  %s6 = sld [smem:[#allocation0]]
  $region53: #{tpu_custom_call.1} parent=0
    _
  %s8 = ssub.s32 1, %s6
  %s9 = scalar_select 0, %s8, %s6
  $region1: #{tpu_custom_call.1} parent=0
    #allocation2 [shape = 'u8[24576]{0}', space=vmem, size = 0x6000, scoped, tag = 'output window, operand 0']
    #allocation3 [shape = 's32[2]{0}', space=sflag, size = 0x8, scoped, tag = 'scoped memory for tpu_custom_call.1']
    %10 = vsyncpa [#allocation3], 0
    %s11 = scalar_lea.sflag [#allocation3], 1
    %12 = vsyncpa %s11, 0
    loop: start=0, step=1, limit=4
    $region2: #{tpu_custom_call.1} parent=1 // loop_pre_header
      _
    $region3: #{tpu_custom_call.1} parent=1 // loop_header
      %s14 = sphi 0, %s18
      %p15 = scmp.ge.s32.totalorder %s14, 4
      %s24 = sphi 0, %s26
      %s27 = sphi 0, %s24
      %s28 = sphi 0, %s27
      %s44 = sphi 0, %s28
      %s48 = sphi 0, %s48
      %s50 = sphi 0, %s48
      %s51 = sphi 0, %s50
      %s65 = sphi 0, %s51
      %s69 = sphi 0, %s69
      %s71 = sphi 0, %s69
      %s72 = sphi 0, %s71
      %s86 = sphi 0, %s72
      %s90 = sphi 0, %s90
      %s92 = sphi 0, %s90
      %s93 = sphi 0, %s92
      %s107 = sphi 0, %s93
      %s111 = sphi 0, %s111
      %s113 = sphi 0, %s111
      %s114 = sphi 0, %s113
      %s128 = sphi 0, %s114
      %s134 = sphi 0, %s136
      %s137 = sphi 0, %s134
      %s138 = sphi 0, %s137
      %s154 = sphi 0, %s138
    $region4: #{tpu_custom_call.1} parent=1 // loop_header_branch
      %17 = sbr.rel (%p15) target = $region8
    $region5: #{tpu_custom_call.1} parent=1 // loop_body
      %s19 = ssub.s32 %s14, 1
      %s20 = ssub.s32 %s14, 2
      %s21 = sadd.s32 %s14, 1
      %s22 = ssub.s32 %s14, %s21
      %p23 = scmp.eq.s32.totalorder %s22, 0
      %s25 = sadd.s32 %s24, 1
      %s26 = scalar_select %p23, %s24, %s25
      %p29 = pneg %p23
      %p30 = scmp.eq.s32.totalorder %s14, 1
      %p31 = por %p29, %p30
      %p32 = scmp.ne.s32.totalorder %s24, %s27
      %p33 = scmp.eq.s32.totalorder %s14, 0
      %p34 = por %p32, %p33
      %p35 = scmp.ne.s32.totalorder %s24, %s27
      %p36 = scmp.eq.s32.totalorder %s19, 1
      %p37 = por %p35, %p36
      %p38 = scmp.ne.s32.totalorder %s27, %s28
      %p39 = scmp.eq.s32.totalorder %s19, 0
      %p40 = por %p38, %p39
      %p41 = scmp.ne.s32.totalorder %s27, %s28
      %p42 = scmp.eq.s32.totalorder %s20, 1
      %p43 = por %p41, %p42
      %p45 = scmp.ne.s32.totalorder %s28, %s44
      %p46 = scmp.eq.s32.totalorder %s20, 0
      %p47 = por %p45, %p46
      %s49 = sadd.s32 %s48, 1
      %p52 = scmp.eq.s32.totalorder %s14, 1
      %p53 = scmp.ne.s32.totalorder %s48, %s50
      %p54 = scmp.eq.s32.totalorder %s14, 0
      %p55 = por %p53, %p54
      %p56 = scmp.ne.s32.totalorder %s48, %s50
      %p57 = scmp.eq.s32.totalorder %s19, 1
      %p58 = por %p56, %p57
      %p59 = scmp.ne.s32.totalorder %s50, %s51
      %p60 = scmp.eq.s32.totalorder %s19, 0
      %p61 = por %p59, %p60
      %p62 = scmp.ne.s32.totalorder %s50, %s51
      %p63 = scmp.eq.s32.totalorder %s20, 1
      %p64 = por %p62, %p63
      %p66 = scmp.ne.s32.totalorder %s51, %s65
      %p67 = scmp.eq.s32.totalorder %s20, 0
      %p68 = por %p66, %p67
      %s70 = sadd.s32 %s69, 1
      %p73 = scmp.eq.s32.totalorder %s14, 1
      %p74 = scmp.ne.s32.totalorder %s69, %s71
      %p75 = scmp.eq.s32.totalorder %s14, 0
      %p76 = por %p74, %p75
      %p77 = scmp.ne.s32.totalorder %s69, %s71
      %p78 = scmp.eq.s32.totalorder %s19, 1
      %p79 = por %p77, %p78
      %p80 = scmp.ne.s32.totalorder %s71, %s72
      %p81 = scmp.eq.s32.totalorder %s19, 0
      %p82 = por %p80, %p81
      %p83 = scmp.ne.s32.totalorder %s71, %s72
      %p84 = scmp.eq.s32.totalorder %s20, 1
      %p85 = por %p83, %p84
      %p87 = scmp.ne.s32.totalorder %s72, %s86
      %p88 = scmp.eq.s32.totalorder %s20, 0
      %p89 = por %p87, %p88
      %s91 = sadd.s32 %s90, 1
      %p94 = scmp.eq.s32.totalorder %s14, 1
      %p95 = scmp.ne.s32.totalorder %s90, %s92
      %p96 = scmp.eq.s32.totalorder %s14, 0
      %p97 = por %p95, %p96
      %p98 = scmp.ne.s32.totalorder %s90, %s92
      %p99 = scmp.eq.s32.totalorder %s19, 1
      %p100 = por %p98, %p99
      %p101 = scmp.ne.s32.totalorder %s92, %s93
      %p102 = scmp.eq.s32.totalorder %s19, 0
      %p103 = por %p101, %p102
      %p104 = scmp.ne.s32.totalorder %s92, %s93
      %p105 = scmp.eq.s32.totalorder %s20, 1
      %p106 = por %p104, %p105
      %p108 = scmp.ne.s32.totalorder %s93, %s107
      %p109 = scmp.eq.s32.totalorder %s20, 0
      %p110 = por %p108, %p109
      %s112 = sadd.s32 %s111, 1
      %p115 = scmp.eq.s32.totalorder %s14, 1
      %p116 = scmp.ne.s32.totalorder %s111, %s113
      %p117 = scmp.eq.s32.totalorder %s14, 0
      %p118 = por %p116, %p117
      %p119 = scmp.ne.s32.totalorder %s111, %s113
      %p120 = scmp.eq.s32.totalorder %s19, 1
      %p121 = por %p119, %p120
      %p122 = scmp.ne.s32.totalorder %s113, %s114
      %p123 = scmp.eq.s32.totalorder %s19, 0
      %p124 = por %p122, %p123
      %p125 = scmp.ne.s32.totalorder %s113, %s114
      %p126 = scmp.eq.s32.totalorder %s20, 1
      %p127 = por %p125, %p126
      %p129 = scmp.ne.s32.totalorder %s114, %s128
      %p130 = scmp.eq.s32.totalorder %s20, 0
      %p131 = por %p129, %p130
      %s132 = ssub.s32 %s14, %s21
      %p133 = scmp.eq.s32.totalorder %s132, 0
      %s135 = sadd.s32 %s134, 1
      %s136 = scalar_select %p133, %s134, %s135
      %p139 = pneg %p133
      %p140 = scmp.eq.s32.totalorder %s14, 1
      %p141 = por %p139, %p140
      %p142 = scmp.ne.s32.totalorder %s134, %s137
      %p143 = scmp.eq.s32.totalorder %s14, 0
      %p144 = por %p142, %p143
      %p145 = scmp.ne.s32.totalorder %s134, %s137
      %p146 = scmp.eq.s32.totalorder %s19, 1
      %p147 = por %p145, %p146
      %p148 = scmp.ne.s32.totalorder %s137, %s138
      %p149 = scmp.eq.s32.totalorder %s19, 0
      %p150 = por %p148, %p149
      %p151 = scmp.ne.s32.totalorder %s137, %s138
      %p152 = scmp.eq.s32.totalorder %s20, 1
      %p153 = por %p151, %p152
      %p155 = scmp.ne.s32.totalorder %s138, %s154
      %p156 = scmp.eq.s32.totalorder %s20, 0
      %p157 = por %p155, %p156
      %p158 = scmp.le.s32.totalorder 1, %s14
      %p159 = scmp.lt.s32.totalorder %s14, 3
      %p160 = pnand %p158, %p159
      %p161 = pneg %p160
      // Predicated region
      $region9: #{tpu_custom_call.1} parent=5 // pred_check
        _
      $region10: #{tpu_custom_call.1} parent=5 // pred_check_branch
        %163 = sbr.rel (%p160) target = $region12
      $region11: #{tpu_custom_call.1} parent=5 // pred_region
        %s164 = ssub.s32 %s14, 1
        // Predicated region
        $region13: #{tpu_custom_call.1} parent=11 // pred_check
          %p165 = pneg %p61
        $region14: #{tpu_custom_call.1} parent=11 // pred_check_branch
          %167 = sbr.rel (%p165) target = $region16
        $region15: #{tpu_custom_call.1} parent=11 // pred_region
          _
        $region16: #{tpu_custom_call.1} parent=11 // pred_fallthru
          _
        // Predicated region
        $region17: #{tpu_custom_call.1} parent=11 // pred_check
          %p168 = pneg %p82
        $region18: #{tpu_custom_call.1} parent=11 // pred_check_branch
          %170 = sbr.rel (%p168) target = $region20
        $region19: #{tpu_custom_call.1} parent=11 // pred_region
          _
        $region20: #{tpu_custom_call.1} parent=11 // pred_fallthru
          _
        // Predicated region
        $region21: #{tpu_custom_call.1} parent=11 // pred_check
          %p171 = pneg %p103
        $region22: #{tpu_custom_call.1} parent=11 // pred_check_branch
          %173 = sbr.rel (%p171) target = $region24
        $region23: #{tpu_custom_call.1} parent=11 // pred_region
          _
        $region24: #{tpu_custom_call.1} parent=11 // pred_fallthru
          _
        // Predicated region
        $region25: #{tpu_custom_call.1} parent=11 // pred_check
          %p174 = pneg %p124
        $region26: #{tpu_custom_call.1} parent=11 // pred_check_branch
          %176 = sbr.rel (%p174) target = $region28
        $region27: #{tpu_custom_call.1} parent=11 // pred_region
          _
        $region28: #{tpu_custom_call.1} parent=11 // pred_fallthru
          _
      $region12: #{tpu_custom_call.1} parent=5 // pred_fallthru
        _
      %p177 = scmp.lt.s32.totalorder %s14, 2
      // Predicated region
      $region29: #{tpu_custom_call.1} parent=5 // pred_check
        %p178 = pneg %p177
      $region30: #{tpu_custom_call.1} parent=5 // pred_check_branch
        %180 = sbr.rel (%p178) target = $region32
      $region31: #{tpu_custom_call.1} parent=5 // pred_region
        // Predicated region
        $region33: #{tpu_custom_call.1} parent=31 // pred_check
          %p181 = pneg %p34
        $region34: #{tpu_custom_call.1} parent=31 // pred_check_branch
          %183 = sbr.rel (%p181) target = $region36
        $region35: #{tpu_custom_call.1} parent=31 // pred_region
          %p184 = scmp.lt.s32.totalorder %s14, 1
          %s185 = scalar_select %p184, %s14, 1
          %s186 = smul.addr %s185, 3
          %s187 = smul.addr %s186, 4
          %s188 = scalar_lea.vmem %s0, %s187
        $region36: #{tpu_custom_call.1} parent=31 // pred_fallthru
          _
      $region32: #{tpu_custom_call.1} parent=5 // pred_fallthru
        _
      %p189 = scmp.le.s32.totalorder 1, %s14
      %p190 = scmp.lt.s32.totalorder %s14, 3
      %p191 = pnand %p189, %p190
      %p192 = pneg %p191
      // Predicated region
      $region37: #{tpu_custom_call.1} parent=5 // pred_check
        _
      $region38: #{tpu_custom_call.1} parent=5 // pred_check_branch
        %194 = sbr.rel (%p191) target = $region40
      $region39: #{tpu_custom_call.1} parent=5 // pred_region
        %s195 = ssub.s32 %s14, 1
        %p196 = scmp.lt.s32.totalorder %s19, 1
        %s197 = scalar_select %p196, %s19, 1
        %s198 = smul.addr %s197, 3
        %s199 = smul.addr %s198, 4
        %s200 = scalar_lea.vmem %s0, %s199
        %p201 = pneg %p40
        %p202 = pneg %p37
        %p203 = pneg %p61
        %p204 = pneg %p58
        %p205 = pneg %p82
        %p206 = pneg %p79
        %p207 = pneg %p103
        %p208 = pneg %p100
        %p209 = pneg %p124
        %p210 = pneg %p121
        %p211 = pneg %p150
        %p212 = pneg %p147
        %s213 = sand.u32 %s137, 1
        %s214 = scalar_lea.sflag [#allocation3], %s213
        %s215 = sand.u32 %s137, 1
        %s216 = smul.addr %s215, 24
        %s217 = scalar_lea.vmem [#allocation2], %s216
        %p218 = scmp.lt.s32.totalorder %s19, 1
        %s219 = scalar_select %p218, %s19, 1
        %s220 = smul.addr %s219, 3
        %s221 = smul.addr %s220, 4
        %s222 = scalar_lea.vmem %s0, %s221
        %v224 = vld [vmem:[%s222] sm:$0xf]
        %v225 = vld [vmem:[%s222 + $0x4] sm:$0xf]
        %v226 = vld [vmem:[%s222 + $0x8] sm:$0xf]
        %v227 = vld [vmem:[%s1] sm:$0xf]
        %v228 = vld [vmem:[%s1 + $0x4] sm:$0xf]
        %v229 = vld [vmem:[%s1 + $0x8] sm:$0xf]
        %v230 = vld [vmem:[%s1 + $0xc] sm:$0xf]
        %v231 = vld [vmem:[%s1 + $0x10] sm:$0xf]
        %v232 = vld [vmem:[%s1 + $0x14] sm:$0xf]
        %v233 = vld [vmem:[%s1 + $0x18] sm:$0xf]
        %v234 = vld [vmem:[%s1 + $0x1c] sm:$0xf]
        %v235 = vld [vmem:[%s1 + $0x20] sm:$0xf]
        %v236 = vld [vmem:[%s1 + $0x24] sm:$0xf]
        %v237 = vld [vmem:[%s1 + $0x28] sm:$0xf]
        %v238 = vld [vmem:[%s1 + $0x2c] sm:$0xf]
        %v239 = vld [vmem:[%s1 + $0x30] sm:$0xf]
        %v240 = vld [vmem:[%s1 + $0x34] sm:$0xf]
        %v241 = vld [vmem:[%s1 + $0x38] sm:$0xf]
        %v242 = vld [vmem:[%s1 + $0x3c] sm:$0xf]
        %v243 = vld [vmem:[%s2] sm:$0x1]
        %v245 = vlaneseq
        %v246 = vshrl.u32 %v245, 7
        %v247 = vsub.s32 0, %v246
        %v248 = vrot.slane %v243, %v247
        %v253 = vunpack.c.l.b16 %v224
        %v254 = vunpack.c.l.b16 %v225
        %v255 = vunpack.c.l.b16 %v226
        %v256 = vpack.c.b16 %v254, %v253
        %v257 = vpack.c.b16 %v255, %v255
        %v276 = vunpack.c.l.b16 %v227
        %v277 = vunpack.c.l.b16 %v228
        %v278 = vunpack.c.l.b16 %v229
        %v279 = vunpack.c.l.b16 %v230
        %v280 = vunpack.c.l.b16 %v231
        %v281 = vunpack.c.l.b16 %v232
        %v282 = vunpack.c.l.b16 %v233
        %v283 = vunpack.c.l.b16 %v234
        %v284 = vunpack.c.l.b16 %v235
        %v285 = vunpack.c.l.b16 %v236
        %v286 = vunpack.c.l.b16 %v237
        %v287 = vunpack.c.l.b16 %v238
        %v288 = vunpack.c.l.b16 %v239
        %v289 = vunpack.c.l.b16 %v240
        %v290 = vunpack.c.l.b16 %v241
        %v291 = vunpack.c.l.b16 %v242
        %v292 = vpack.c.b16 %v277, %v276
        %v293 = vpack.c.b16 %v279, %v278
        %v294 = vpack.c.b16 %v281, %v280
        %v295 = vpack.c.b16 %v283, %v282
        %v296 = vpack.c.b16 %v285, %v284
        %v297 = vpack.c.b16 %v287, %v286
        %v298 = vpack.c.b16 %v289, %v288
        %v299 = vpack.c.b16 %v291, %v290
        %308 = vmatprep.subr.bf16.mxu0 0
        %309 = vmatpush1.bf16.msra.mxu0 %v299
        %310 = vmatprep.subr.bf16.mxu0 0
        %311 = vmatpush1.bf16.msra.mxu0 %v298
        %312 = vmatprep.subr.bf16.mxu0 0
        %313 = vmatpush1.bf16.msra.mxu0 %v297
        %314 = vmatprep.subr.bf16.mxu0 0
        %315 = vmatpush1.bf16.msra.mxu0 %v296
        %316 = vmatprep.subr.bf16.mxu0 0
        %317 = vmatpush1.bf16.msra.mxu0 %v295
        %318 = vmatprep.subr.bf16.mxu0 0
        %319 = vmatpush1.bf16.msra.mxu0 %v294
        %320 = vmatprep.subr.bf16.mxu0 0
        %321 = vmatpush1.bf16.msra.mxu0 %v293
        %322 = vmatprep.subr.bf16.mxu0 0
        %323 = vmatpush1.bf16.msra.mxu0 %v292
        %324 = vmatprep.subr.bf16.mxu0 0
        %325 = vmatpush2.bf16.msra.mxu0 0
        %326 = vmatprep.subr.bf16.mxu0 0
        %327 = vmatpush2.bf16.msra.mxu0 0
        %328 = vmatprep.subr.bf16.mxu0 0
        %329 = vmatpush2.bf16.msra.mxu0 0
        %330 = vmatprep.subr.bf16.mxu0 0
        %331 = vmatpush2.bf16.msra.mxu0 0
        %332 = vmatprep.subr.bf16.mxu0 0
        %333 = vmatpush2.bf16.msra.mxu0 0
        %334 = vmatprep.subr.bf16.mxu0 0
        %335 = vmatpush2.bf16.msra.mxu0 0
        %336 = vmatprep.subr.bf16.mxu0 0
        %337 = vmatpush2.bf16.msra.mxu0 0
        %338 = vmatprep.subr.bf16.mxu0 0
        %339 = vmatpush2.bf16.msra.mxu0 0
        %340 = vmatprep.mubr.bf16.mxu0 0
        %341 = vmatmul.mubr.bf16.gmra.mxu0 %v256
        %v342 = vpop.f32.mrf.mxu0
        %v343 = vadd.f32 %v248, %v342
        %v344 = vpop.f32.mrf.mxu0
        %v345 = vpop.f32.mrf.mxu0
        %v346 = vadd.f32 %v248, %v345
        %v347 = vpop.f32.mrf.mxu0
        %348 = vmatprep.mubr.bf16.mxu0 0
        %349 = vmatmul.mubr.bf16.gmra.mxu0 %v257
        %v350 = vpop.f32.mrf.mxu0
        %v351 = vadd.f32 %v248, %v350
        %v352 = vpop.f32.mrf.mxu0
        %v353 = vpop.f32.mrf.mxu0
        %v354 = vpop.f32.mrf.mxu0
        %355 = vdwg.mxu0
        %v356 = vlaneseq
        %v357 = vshrl.u32 %v356, 7
        %v358 = vadd.s32 %v357, 8
        %v359 = vadd.s32 %v357, 16
        %vm360 = vcmp.eq.s32.totalorder %v357, 0
        %vm361 = vcmp.eq.s32.totalorder %v358, 0
        %vm362 = vcmp.eq.s32.totalorder %v359, 0
        %v363 = vld [vmem:[%s3] sm:$0x1]
        %v364 = vsel %vm360, 1, 0
        %v365 = vsel %vm361, 1, 0
        %v366 = vsel %vm362, 1, 0
        %vm367 = vcmp.eq.s32.totalorder %v364, 1
        %vm368 = vcmp.eq.s32.totalorder %v365, 1
        %vm369 = vcmp.eq.s32.totalorder %v366, 1
        %v371 = vlaneseq
        %v372 = vshrl.u32 %v371, 7
        %v373 = vsub.s32 0, %v372
        %v374 = vrot.slane %v363, %v373
        %v376 = vsel %vm367, %v374, %v343
        %v377 = vsel %vm368, %v374, %v346
        %v378 = vsel %vm369, %v374, %v351
        %vm379 = vcmp.lt.s32.totalorder %v357, 17
        %vm380 = vcmp.lt.s32.totalorder %v358, 17
        %vm381 = vcmp.lt.s32.totalorder %v359, 17
        %v382 = vld [vmem:[%s4] sm:$0xff]
        %v383 = vld [vmem:[%s4 + $0x8] sm:$0xff]
        %v384 = vld [vmem:[%s4 + $0x10] sm:$0xff]
        %v385 = vadd.f32 %v376, %v382
        %v386 = vadd.f32 %v377, %v383
        %v387 = vadd.f32 %v378, %v384
        %v388 = vsel %vm379, 1, 0
        %v389 = vsel %vm380, 1, 0
        %v390 = vsel %vm381, 1, 0
        %vm391 = vcmp.eq.s32.totalorder %v388, 1
        %vm392 = vcmp.eq.s32.totalorder %v389, 1
        %vm393 = vcmp.eq.s32.totalorder %v390, 1
        %v394 = vsel %vm391, %v385, 0.0
        %v395 = vsel %vm392, %v386, 0.0
        %v396 = vsel %vm393, %v387, 0.0
        %vm397 = vcmask 261120
        %398 = vst.msk [vmem:[%s217] sm:$0xff] %vm397, %v394
        %399 = vst.msk [vmem:[%s217 + $0x8] sm:$0xff] %vm397, %v395
        %400 = vst.msk [vmem:[%s217 + $0x10] sm:$0xff] %vm397, %v396
        %s401 = sand.u32 %s137, 1
        %s402 = scalar_lea.sflag [#allocation3], %s401
        %s403 = sand.u32 %s137, 1
        %s404 = smul.addr %s403, 24
        %s405 = scalar_lea.vmem [#allocation2], %s404
        // Predicated region
        $region41: #{tpu_custom_call.1} parent=39 // pred_check
          %p406 = pneg %p147
        $region42: #{tpu_custom_call.1} parent=39 // pred_check_branch
          %408 = sbr.rel (%p406) target = $region44
        $region43: #{tpu_custom_call.1} parent=39 // pred_region
          %s410 = ssub.s32 384, 384
          %411 = vsyncadd %s402, %s410
          %s412 = smul.addr %s19, 3
          %s413 = smul.addr %s412, 128
          %s414 = scalar_lea.hbm %s5, %s413
          %s415 = sshll.u32 %s405, 4
          %s416 = int_to_ptr.vmem [resolvable:$true] %s415
          %421 = dma.vmem_to_hbm [thread:$0]  %s416, 384, %s414, %s402, 128, 128, 8
        $region44: #{tpu_custom_call.1} parent=39 // pred_fallthru
          _
      $region40: #{tpu_custom_call.1} parent=5 // pred_fallthru
        _
      %p422 = scmp.le.s32.totalorder 2, %s14
      // Predicated region
      $region45: #{tpu_custom_call.1} parent=5 // pred_check
        %p423 = pneg %p422
      $region46: #{tpu_custom_call.1} parent=5 // pred_check_branch
        %425 = sbr.rel (%p423) target = $region48
      $region47: #{tpu_custom_call.1} parent=5 // pred_region
        %s426 = ssub.s32 %s14, 2
        // Predicated region
        $region49: #{tpu_custom_call.1} parent=47 // pred_check
          %p427 = pneg %p153
        $region50: #{tpu_custom_call.1} parent=47 // pred_check_branch
          %429 = sbr.rel (%p427) target = $region52
        $region51: #{tpu_custom_call.1} parent=47 // pred_region
          %s430 = sand.u32 %s138, 1
          %s431 = scalar_lea.sflag [#allocation3], %s430
          %s432 = sand.u32 %s138, 1
          %s433 = smul.addr %s432, 24
          %s434 = scalar_lea.vmem [#allocation2], %s433
          %435 = dma.done %s431, 384
        $region52: #{tpu_custom_call.1} parent=47 // pred_fallthru
          _
      $region48: #{tpu_custom_call.1} parent=5 // pred_fallthru
        _
    $region6: #{tpu_custom_call.1} parent=1 // loop_footer
      %s18 = sadd.s32 1, %s14
    $region7: #{tpu_custom_call.1} parent=1 // loop_footer_branch
      %13 = sbr.rel target = $region3
    $region8: #{tpu_custom_call.1} parent=1 // loop_exit
      _
    %436 = vsyncpa [#allocation3], 1
    %s437 = scalar_lea.sflag [#allocation3], 1
    %438 = vsyncpa %s437, 1

</llo_original>
